<compile_context>
chip_gen: v5e
topology: v5e:2x2
jax: 0.10.0
libtpu: 0.0.40
codegen_flags: <defaults>
</compile_context>

<pallas_src>
import jax
import jax.numpy as jnp
from jax.experimental import pallas as pl
from jax.experimental.pallas import tpu as pltpu


def _round_up(n: int, m: int) -> int:
    return ((n + m - 1) // m) * m


def classifier_kernel(x_ref, w_ref, b_ref, o_ref):
    # Cast to bf16 in-kernel (x streams in as f32, no separate XLA cast pass).
    x = x_ref[...].astype(jnp.bfloat16)
    # Linear: (TB, F) @ (F, C_pad) on the MXU, f32 accumulation.
    logits = jnp.dot(x, w_ref[...], preferred_element_type=jnp.float32)
    logits = logits + b_ref[...]  # (1, C_pad) resident bias; padded lanes = -1e30
    # Numerically stable softmax over the (narrow, padded) class lanes.
    m = jnp.max(logits, axis=-1, keepdims=True)
    e = jnp.exp(logits - m)                       # padded lanes -> exp(-1e30) == 0
    s = jnp.sum(e, axis=-1, keepdims=True)
    inv = pl.reciprocal(s, approx=False)          # one exact reciprocal per row
    o_ref[...] = (e * inv).astype(o_ref.dtype)    # (TB, C_pad) store, C_pad == 8


def classifier_layer(x, w, b, *, block_rows=4096, compute_dtype=jnp.bfloat16):
    """x: (B, F) f32, w: (F, C), b: (C,) -> softmax probabilities (B, C) f32."""
    B, F = x.shape
    C = w.shape[1]
    # Narrow class padding: multiple of 8 lanes (32 B per row), min 8.
    C_pad = max(_round_up(C, 8), 8)

    # Padded weight / bias (tiny). Extra class lanes: zero weight columns and a
    # huge negative bias so softmax ignores them exactly.
    w_p = jnp.zeros((F, C_pad), compute_dtype).at[:, :C].set(w.astype(compute_dtype))
    b_p = jnp.full((1, C_pad), -1e30, jnp.float32).at[0, :C].set(b.astype(jnp.float32))

    # Batch tiling: TB multiple of 8 (sublanes), capped by block_rows, and split
    # into >= 2 tiles when B >= 16 so the "parallel" axis can shard across the
    # two v7x TensorCores (extra grid step costs ~0.35 us on 1-TC chips).
    if B <= 8:
        TB = 8
    else:
        TB = min(block_rows, _round_up(-(-B // 2), 8))
    grid = (pl.cdiv(B, TB),)   # partial tail block handled by Pallas masking

    out = pl.pallas_call(
        classifier_kernel,
        out_shape=jax.ShapeDtypeStruct((B, C_pad), jnp.float32),
        grid=grid,
        in_specs=[
            pl.BlockSpec((TB, F), lambda i: (i, 0)),       # x: f32, streamed per tile
            pl.BlockSpec((F, C_pad), lambda i: (0, 0)),     # w: VMEM-resident
            pl.BlockSpec((1, C_pad), lambda i: (0, 0)),     # b: VMEM-resident
        ],
        out_specs=pl.BlockSpec((TB, C_pad), lambda i: (i, 0)),  # narrow (TB, 8) f32
        compiler_params=pltpu.CompilerParams(
            dimension_semantics=("parallel",),
        ),
        cost_estimate=pl.CostEstimate(
            flops=2 * B * F * C_pad,
            transcendentals=B * C_pad,
            bytes_accessed=(B * F * jnp.dtype(x.dtype).itemsize      # f32 x read
                            + F * C_pad * jnp.dtype(compute_dtype).itemsize  # w
                            + C_pad * 4                              # bias
                            + B * C_pad * 4),                        # narrow output
        ),
    )(x, w_p, b_p)
    return out[:, :C]


def init_params(key, in_features=300, out_features=2):
    # nn.Linear-style init: U(-1/sqrt(fan_in), 1/sqrt(fan_in)).
    kw, kb = jax.random.split(key)
    bound = 1.0 / (in_features ** 0.5)
    # PyTorch stores weight as (out, in); keep it transposed (in, out) here.
    w = jax.random.uniform(kw, (in_features, out_features), jnp.float32, -bound, bound)
    b = jax.random.uniform(kb, (out_features,), jnp.float32, -bound, bound)
    return w, b


if __name__ == "__main__":
    key = jax.random.PRNGKey(0)
    kx, kp = jax.random.split(key)

    in_features, out_features, batch = 300, 2, 8
    x = jax.random.normal(kx, (batch, in_features), jnp.float32)
    w, b = init_params(kp, in_features, out_features)

    probs = jax.block_until_ready(classifier_layer(x, w, b))
    assert probs.shape == (batch, out_features)

    # Reference with the same bf16-cast inputs (f32 accumulation) isolates the
    # kernel from the deliberate in-kernel bf16 cast.
    xb = x.astype(jnp.bfloat16).astype(jnp.float32)
    wb = w.astype(jnp.bfloat16).astype(jnp.float32)
    ref_bf16 = jax.nn.softmax(xb @ wb + b, axis=1)
    assert jnp.allclose(probs, ref_bf16, atol=1e-4), "mismatch vs bf16-input reference"

    # Looser check against the full-precision f32 reference (bf16 cast error).
    ref_f32 = jax.nn.softmax(x @ w + b, axis=1)
    assert jnp.allclose(probs, ref_f32, atol=1e-2), "mismatch vs f32 reference"

    # Softmax rows sum to 1 (padded class lanes contribute exactly zero).
    assert jnp.allclose(jnp.sum(probs, axis=1), 1.0, atol=1e-5)

    print("KERNEL_OK")
</pallas_src>

<mosaic_0001>
module attributes {stable_mosaic.version = 11 : i64} {
  func.func @classifier_kernel(%arg0: i32, %arg1: memref<8x300xf32, #tpu.memory_space<vmem>>, %arg2: memref<300x8xbf16, #tpu.memory_space<vmem>>, %arg3: memref<1x8xf32, #tpu.memory_space<vmem>>, %arg4: memref<8x8xf32, #tpu.memory_space<vmem>>) attributes {dimension_semantics = [#tpu.dimension_semantics<parallel>], iteration_bounds = array<i64: 1>, scalar_prefetch = 0 : i64, scratch_operands = 0 : i64, tpu.core_type = #tpu.core_type<tc>, window_params = [{transform_indices = @transform_0, window_bounds = array<i64: 8, 300>}, {pipeline_mode = #tpu.pipeline_mode<synchronous>, transform_indices = @transform_1, window_bounds = array<i64: 300, 8>}, {pipeline_mode = #tpu.pipeline_mode<synchronous>, transform_indices = @transform_2, window_bounds = array<i64: 1, 8>}, {transform_indices = @transform_3, window_bounds = array<i64: 8, 8>}]} {
    %c0 = arith.constant 0 : index
    %c0_0 = arith.constant 0 : index
    %0 = vector.load %arg1[%c0, %c0_0] : memref<8x300xf32, #tpu.memory_space<vmem>>, vector<8x300xf32>
    %1 = arith.truncf %0 : vector<8x300xf32> to vector<8x300xbf16>
    %c0_1 = arith.constant 0 : index
    %c0_2 = arith.constant 0 : index
    %2 = vector.load %arg2[%c0_1, %c0_2] : memref<300x8xbf16, #tpu.memory_space<vmem>>, vector<300x8xbf16>
    %cst = arith.constant dense<0.000000e+00> : vector<8x8xf32>
    %3 = tpu.matmul %1, %2, %cst {dimension_numbers = #tpu.dot_dimension_numbers<[1], [0], [0], [1], [0, 0, 1, 1], [], []>} : vector<8x300xbf16>, vector<300x8xbf16>, vector<8x8xf32> -> vector<8x8xf32>
    %c0_3 = arith.constant 0 : index
    %c0_4 = arith.constant 0 : index
    %4 = vector.load %arg3[%c0_3, %c0_4] : memref<1x8xf32, #tpu.memory_space<vmem>>, vector<1x8xf32>
    %5 = vector.broadcast %4 : vector<1x8xf32> to vector<8x8xf32>
    %6 = arith.addf %3, %5 : vector<8x8xf32>
    %cst_5 = arith.constant dense<0xFF800000> : vector<8xf32>
    %7 = vector.multi_reduction <maximumf>, %6, %cst_5 [1] : vector<8x8xf32> to vector<8xf32>
    %8 = vector.shape_cast %7 : vector<8xf32> to vector<8x1xf32>
    %9 = vector.broadcast %8 : vector<8x1xf32> to vector<8x8xf32>
    %10 = arith.subf %6, %9 : vector<8x8xf32>
    %11 = math.exp %10 : vector<8x8xf32>
    %cst_6 = arith.constant dense<0.000000e+00> : vector<8xf32>
    %12 = vector.multi_reduction <add>, %11, %cst_6 [1] : vector<8x8xf32> to vector<8xf32>
    %13 = vector.shape_cast %12 : vector<8xf32> to vector<8x1xf32>
    %14 = tpu.reciprocal %13 : vector<8x1xf32> -> vector<8x1xf32>
    %15 = vector.broadcast %14 : vector<8x1xf32> to vector<8x8xf32>
    %16 = arith.mulf %11, %15 : vector<8x8xf32>
    %c0_7 = arith.constant 0 : index
    %c0_8 = arith.constant 0 : index
    %17 = vector.load %arg4[%c0_7, %c0_8] : memref<8x8xf32, #tpu.memory_space<vmem>>, vector<8x8xf32>
    tpu.vector_store %arg4[%c0_7, %c0_8], %16 {strides = array<i32>} : memref<8x8xf32, #tpu.memory_space<vmem>>, vector<8x8xf32>,
    return
  }
  func.func @transform_0(%arg0: i32) -> (i32, i32) {
    %c0_i32 = arith.constant 0 : i32
    %c0_i32_0 = arith.constant 0 : i32
    return %arg0, %c0_i32 : i32, i32
  }
  func.func @transform_1(%arg0: i32) -> (i32, i32) {
    %c0_i32 = arith.constant 0 : i32
    %c0_i32_0 = arith.constant 0 : i32
    %c0_i32_1 = arith.constant 0 : i32
    return %c0_i32, %c0_i32_0 : i32, i32
  }
  func.func @transform_2(%arg0: i32) -> (i32, i32) {
    %c0_i32 = arith.constant 0 : i32
    %c0_i32_0 = arith.constant 0 : i32
    %c0_i32_1 = arith.constant 0 : i32
    return %c0_i32, %c0_i32_0 : i32, i32
  }
  func.func @transform_3(%arg0: i32) -> (i32, i32) {
    %c0_i32 = arith.constant 0 : i32
    %c0_i32_0 = arith.constant 0 : i32
    return %arg0, %c0_i32 : i32, i32
  }
}

</mosaic_0001>

<llo_original>
// kernel: tpu_custom_call.1
$region0: #{tpu_custom_call.1}
  #allocation0 [shape = 'u32[]', space=smem, size = 0x4, offset = 0x4, fixed_abs, tag = 'smem constant byte address 0x4 - core index']
  #allocation1 [shape = 'u32[72,128]{1,0:T(1,128)}', space=vmem, size = 0x9000, scoped, tag = 'internal scratch']
  %s0 = inlined_call_operand.vmem [shape: f32[8,300], index: 0, kind: input, shape index: {}]
  %s1 = inlined_call_operand.vmem [shape: bf16[300,8], index: 1, kind: input, shape index: {}]
  %s2 = inlined_call_operand.vmem [shape: f32[1,8], index: 2, kind: input, shape index: {}]
  %s3 = inlined_call_operand.hbm [shape: f32[8,8], index: 3, kind: output, shape index: {}]
  %s4 = sld [smem:[#allocation0]]
  $region22: #{tpu_custom_call.1} parent=0
    _
  %s6 = ssub.s32 1, %s4
  %s7 = scalar_select 0, %s6, %s4
  $region1: #{tpu_custom_call.1} parent=0
    #allocation2 [shape = 'u8[4096]{0}', space=vmem, size = 0x1000, scoped, tag = 'output window, operand 0, single buffered']
    #allocation3 [shape = 's32[1]{0}', space=sflag, size = 0x4, scoped, tag = 'scoped memory for tpu_custom_call.1']
    %8 = vsyncpa [#allocation3], 0
    // Predicated region
    $region2: #{tpu_custom_call.1} parent=1 // pred_check
      _
    $region3: #{tpu_custom_call.1} parent=1 // pred_check_branch
      %10 = sbr.rel (0) target = $region5
    $region4: #{tpu_custom_call.1} parent=1 // pred_region
      _
    $region5: #{tpu_custom_call.1} parent=1 // pred_fallthru
      _
    // Predicated region
    $region6: #{tpu_custom_call.1} parent=1 // pred_check
      _
    $region7: #{tpu_custom_call.1} parent=1 // pred_check_branch
      %12 = sbr.rel (0) target = $region9
    $region8: #{tpu_custom_call.1} parent=1 // pred_region
      _
    $region9: #{tpu_custom_call.1} parent=1 // pred_fallthru
      _
    // Predicated region
    $region10: #{tpu_custom_call.1} parent=1 // pred_check
      _
    $region11: #{tpu_custom_call.1} parent=1 // pred_check_branch
      %14 = sbr.rel (0) target = $region13
    $region12: #{tpu_custom_call.1} parent=1 // pred_region
      _
    $region13: #{tpu_custom_call.1} parent=1 // pred_fallthru
      _
    %v16 = vld [vmem:[%s0] sm:$0xff]
    %v17 = vld [vmem:[%s0 + $0x8] sm:$0xff]
    %v18 = vld [vmem:[%s0 + $0x10] sm:$0xff]
    %v19 = vpack.c.bf16 %v16, %v16
    %v20 = vpack.c.bf16 %v17, %v17
    %v21 = vpack.c.bf16 %v18, %v18
    %v22 = vld [vmem:[%s1] sm:$0xf]
    %v23 = vld [vmem:[%s1 + $0x4] sm:$0xf]
    %v24 = vld [vmem:[%s1 + $0x8] sm:$0xf]
    %v25 = vld [vmem:[%s1 + $0xc] sm:$0xf]
    %v26 = vld [vmem:[%s1 + $0x10] sm:$0xf]
    %v27 = vld [vmem:[%s1 + $0x14] sm:$0xf]
    %v28 = vld [vmem:[%s1 + $0x18] sm:$0xf]
    %v29 = vld [vmem:[%s1 + $0x1c] sm:$0xf]
    %v30 = vld [vmem:[%s1 + $0x20] sm:$0xf]
    %v31 = vld [vmem:[%s1 + $0x24] sm:$0xf]
    %v32 = vld [vmem:[%s1 + $0x28] sm:$0xf]
    %v33 = vld [vmem:[%s1 + $0x2c] sm:$0xf]
    %v34 = vld [vmem:[%s1 + $0x30] sm:$0xf]
    %v35 = vld [vmem:[%s1 + $0x34] sm:$0xf]
    %v36 = vld [vmem:[%s1 + $0x38] sm:$0xf]
    %v37 = vld [vmem:[%s1 + $0x3c] sm:$0xf]
    %v38 = vld [vmem:[%s1 + $0x40] sm:$0xf]
    %v39 = vld [vmem:[%s1 + $0x44] sm:$0xf]
    %v40 = vld [vmem:[%s1 + $0x48] sm:$0xf]
    %v41 = vld [vmem:[%s1 + $0x4c] sm:$0xf]
    %v42 = vld [vmem:[%s1 + $0x50] sm:$0xf]
    %v43 = vld [vmem:[%s1 + $0x54] sm:$0xf]
    %v44 = vld [vmem:[%s1 + $0x58] sm:$0xf]
    %v45 = vld [vmem:[%s1 + $0x5c] sm:$0xf]
    %v46 = vld [vmem:[%s1 + $0x60] sm:$0xf]
    %v47 = vld [vmem:[%s1 + $0x64] sm:$0xf]
    %v48 = vld [vmem:[%s1 + $0x68] sm:$0xf]
    %v49 = vld [vmem:[%s1 + $0x6c] sm:$0xf]
    %v50 = vld [vmem:[%s1 + $0x70] sm:$0xf]
    %v51 = vld [vmem:[%s1 + $0x74] sm:$0xf]
    %v52 = vld [vmem:[%s1 + $0x78] sm:$0xf]
    %v53 = vld [vmem:[%s1 + $0x7c] sm:$0xf]
    %v54 = vld [vmem:[%s1 + $0x80] sm:$0xf]
    %v55 = vld [vmem:[%s1 + $0x84] sm:$0xf]
    %v56 = vld [vmem:[%s1 + $0x88] sm:$0xf]
    %v57 = vld [vmem:[%s1 + $0x8c] sm:$0xf]
    %v58 = vld [vmem:[%s1 + $0x90] sm:$0xf]
    %v59 = vld [vmem:[%s1 + $0x94] sm:$0x3]
    %v60 = vld [vmem:[%s2] sm:$0x1]
    %v62 = vperm.slane %v60, 0
    %v102 = vunpack.c.l.b16 %v22
    %v103 = vunpack.c.l.b16 %v23
    %v104 = vunpack.c.l.b16 %v24
    %v105 = vunpack.c.l.b16 %v25
    %v106 = vunpack.c.l.b16 %v26
    %v107 = vunpack.c.l.b16 %v27
    %v108 = vunpack.c.l.b16 %v28
    %v109 = vunpack.c.l.b16 %v29
    %v110 = vunpack.c.l.b16 %v30
    %v111 = vunpack.c.l.b16 %v31
    %v112 = vunpack.c.l.b16 %v32
    %v113 = vunpack.c.l.b16 %v33
    %v114 = vunpack.c.l.b16 %v34
    %v115 = vunpack.c.l.b16 %v35
    %v116 = vunpack.c.l.b16 %v36
    %v117 = vunpack.c.l.b16 %v37
    %v118 = vunpack.c.l.b16 %v38
    %v119 = vunpack.c.l.b16 %v39
    %v120 = vunpack.c.l.b16 %v40
    %v121 = vunpack.c.l.b16 %v41
    %v122 = vunpack.c.l.b16 %v42
    %v123 = vunpack.c.l.b16 %v43
    %v124 = vunpack.c.l.b16 %v44
    %v125 = vunpack.c.l.b16 %v45
    %v126 = vunpack.c.l.b16 %v46
    %v127 = vunpack.c.l.b16 %v47
    %v128 = vunpack.c.l.b16 %v48
    %v129 = vunpack.c.l.b16 %v49
    %v130 = vunpack.c.l.b16 %v50
    %v131 = vunpack.c.l.b16 %v51
    %v132 = vunpack.c.l.b16 %v52
    %v133 = vunpack.c.l.b16 %v53
    %v134 = vunpack.c.l.b16 %v54
    %v135 = vunpack.c.l.b16 %v55
    %v136 = vunpack.c.l.b16 %v56
    %v137 = vunpack.c.l.b16 %v57
    %v138 = vunpack.c.l.b16 %v58
    %v139 = vunpack.c.l.b16 %v59
    %v140 = vpack.c.b16 %v103, %v102
    %v141 = vpack.c.b16 %v105, %v104
    %v142 = vpack.c.b16 %v107, %v106
    %v143 = vpack.c.b16 %v109, %v108
    %v144 = vpack.c.b16 %v111, %v110
    %v145 = vpack.c.b16 %v113, %v112
    %v146 = vpack.c.b16 %v115, %v114
    %v147 = vpack.c.b16 %v117, %v116
    %v148 = vpack.c.b16 %v119, %v118
    %v149 = vpack.c.b16 %v121, %v120
    %v150 = vpack.c.b16 %v123, %v122
    %v151 = vpack.c.b16 %v125, %v124
    %v152 = vpack.c.b16 %v127, %v126
    %v153 = vpack.c.b16 %v129, %v128
    %v154 = vpack.c.b16 %v131, %v130
    %v155 = vpack.c.b16 %v133, %v132
    %v156 = vpack.c.b16 %v135, %v134
    %v157 = vpack.c.b16 %v137, %v136
    %v158 = vpack.c.b16 %v139, %v138
    %vm177 = vcmask 359424
    %v179 = vsel %vm177, %v21, 0
    %vm181 = vcmask 1045504
    %v183 = vsel %vm181, %v158, 0
    %185 = vmatpush.bf16.msra.mxu0 %v147
    %186 = vmatpush.bf16.msra.mxu0 %v146
    %187 = vmatpush.bf16.msra.mxu0 %v145
    %188 = vmatpush.bf16.msra.mxu0 %v144
    %189 = vmatpush.bf16.msra.mxu0 %v143
    %190 = vmatpush.bf16.msra.mxu0 %v142
    %191 = vmatpush.bf16.msra.mxu0 %v141
    %192 = vmatpush.bf16.msra.mxu0 %v140
    %193 = vmatmul.bf16.gmra.mxu0 %v19
    %v194 = vpop.f32.mrf.mxu0
    %v195 = vadd.f32 %v62, %v194
    %v196 = vpop.f32.mrf.mxu0
    %197 = vdwg.mxu0
    %198 = vmatpush.bf16.msra.mxu0 %v155
    %199 = vmatpush.bf16.msra.mxu0 %v154
    %200 = vmatpush.bf16.msra.mxu0 %v153
    %201 = vmatpush.bf16.msra.mxu0 %v152
    %202 = vmatpush.bf16.msra.mxu0 %v151
    %203 = vmatpush.bf16.msra.mxu0 %v150
    %204 = vmatpush.bf16.msra.mxu0 %v149
    %205 = vmatpush.bf16.msra.mxu0 %v148
    %206 = vmatmul.bf16.gmra.mxu0 %v20
    %v207 = vpop.f32.mrf.mxu0
    %v208 = vadd.f32 %v195, %v207
    %v209 = vpop.f32.mrf.mxu0
    %210 = vdwg.mxu0
    %211 = vmatpush.bf16.msra.mxu0 0
    %212 = vmatpush.bf16.msra.mxu0 0
    %213 = vmatpush.bf16.msra.mxu0 0
    %214 = vmatpush.bf16.msra.mxu0 0
    %215 = vmatpush.bf16.msra.mxu0 0
    %216 = vmatpush.bf16.msra.mxu0 %v183
    %217 = vmatpush.bf16.msra.mxu0 %v157
    %218 = vmatpush.bf16.msra.mxu0 %v156
    %219 = vmatmul.bf16.gmra.mxu0 %v179
    %v220 = vpop.f32.mrf.mxu0
    %v221 = vadd.f32 %v208, %v220
    %v222 = vpop.f32.mrf.mxu0
    %223 = vdwg.mxu0
    %vm224 = vcmask 64512
    %v225 = vsel %vm224, %v221, -inf
    %226 = vmax.xlane.f32.xlu0 %v225
    %v227 = vpop.xlane.xlu0 %226
    %v228 = vsub.f32 %v221, %v227
    %v229 = vmul.f32 %v228, 1.442695
    %v230 = vpow.pop %v229
    %v231 = vsel %vm224, %v230, 0.0
    %232 = vadd.xlane.f32.xlu0 %v231
    %v233 = vpop.xlane.xlu0 %232
    %v234 = vrcp.pop %v233
    %v235 = vmul.f32 %v233, %v234
    %v236 = vsub.f32 1.0, %v235
    %v237 = vmul.f32 %v234, %v236
    %v238 = vadd.f32 %v234, %v237
    %vm239 = vweird.f32 %v233
    %vm240 = vweird.f32 %v234
    %vm241 = vmor %vm239, %vm240
    %v242 = vsel %vm241, %v234, %v238
    %v243 = vand.u32 2147483647, %v233
    %vm244 = vcmp.eq.f32.partialorder %v243, 8.507059e+37
    %v245 = vand.u32 %v233, 2147483648
    %v246 = vor.u32 1.1754944e-38, %v245
    %v247 = vsel %vm244, %v246, %v242
    %v248 = vmul.f32 %v230, %v247
    %249 = vst.msk [vmem:[#allocation2] sm:$0xff] %vm224, %v248
    // Predicated region
    $region14: #{tpu_custom_call.1} parent=1 // pred_check
      _
    $region15: #{tpu_custom_call.1} parent=1 // pred_check_branch
      %251 = sbr.rel (0) target = $region17
    $region16: #{tpu_custom_call.1} parent=1 // pred_region
      %253 = vsyncadd [#allocation3], 0
      %s255 = sshll.u32 [#allocation2], 4
      %s256 = int_to_ptr.vmem [resolvable:$true] %s255
      %s257 = sshll.u32 %s3, 4
      %s258 = int_to_ptr.hbm [resolvable:$true] %s257
      %260 = dma.vmem_to_hbm [thread:$0]  %s256, 128, %s258, [#allocation3]
    $region17: #{tpu_custom_call.1} parent=1 // pred_fallthru
      _
    // Predicated region
    $region18: #{tpu_custom_call.1} parent=1 // pred_check
      _
    $region19: #{tpu_custom_call.1} parent=1 // pred_check_branch
      %262 = sbr.rel (0) target = $region21
    $region20: #{tpu_custom_call.1} parent=1 // pred_region
      %264 = dma.done [#allocation3], 128
    $region21: #{tpu_custom_call.1} parent=1 // pred_fallthru
      _
    %265 = vsyncpa [#allocation3], 1

</llo_original>
